<compile_context>
chip_gen: v7x
topology: tpu7x:2x2x1
jax: 0.10.0
libtpu: 0.0.40
codegen_flags: <defaults>
</compile_context>

<pallas_src>
import functools

import jax
import jax.numpy as jnp
from jax.experimental import pallas as pl
from jax.experimental.pallas import tpu as pltpu


def _round_up(x, m):
    return ((x + m - 1) // m) * m


def _leaky_relu(x, slope=0.1):
    # PyTorch module explicitly uses nn.LeakyReLU(0.1).
    return jnp.where(x >= 0, x, slope * x)


def action_encoder_kernel(x_ref, w1_ref, b1_ref, w2_ref, b2_ref, o_ref):
    # x: [TB, action_dim], w1: [action_dim, 32], b1: [1, 32]
    # w2: [32, 32], b2: [1, 32], o: [TB, 32]
    x = x_ref[...]

    h = jnp.dot(x, w1_ref[...], preferred_element_type=jnp.float32)
    h = h + b1_ref[...]          # broadcast [1, 32] over batch rows
    h = _leaky_relu(h, 0.1)

    y = jnp.dot(h, w2_ref[...], preferred_element_type=jnp.float32)
    y = y + b2_ref[...]
    y = _leaky_relu(y, 0.1)

    o_ref[...] = y.astype(o_ref.dtype)


@functools.partial(jax.jit, static_argnames=("block_rows",))
def action_encoder_forward(action, params, *, block_rows=512):
    """action: [B, action_dim] float32; params: dict of w1, b1, w2, b2."""
    if action is None:
        return None
    w1, b1, w2, b2 = params["w1"], params["b1"], params["w2"], params["b2"]
    B, action_dim = action.shape
    out_dim = w2.shape[1]

    # Batch tile: >= block_rows for large batches, rounded-up-to-8 batch for
    # tiny ones.  (For very small B a plain XLA matmul would beat the fixed
    # pallas_call launch overhead, but the kernel path is kept unconditional
    # here so the Pallas code is always exercised.)
    tb = min(block_rows, _round_up(B, 8))
    b_pad = _round_up(B, tb)
    x = action
    if b_pad != B:
        x = jnp.pad(x, ((0, b_pad - B), (0, 0)))

    grid = (b_pad // tb,)

    # Advisory cost model: two tiny GEMMs per row, completely HBM-bound.
    weight_bytes = 4 * (w1.size + b1.size + w2.size + b2.size)
    cost = pl.CostEstimate(
        flops=2 * b_pad * (action_dim * out_dim + out_dim * out_dim),
        transcendentals=0,
        bytes_accessed=b_pad * (action_dim + out_dim) * 4 + weight_bytes,
    )

    out = pl.pallas_call(
        action_encoder_kernel,
        out_shape=jax.ShapeDtypeStruct((b_pad, out_dim), jnp.float32),
        grid=grid,
        in_specs=[
            # Batch-tiled activation stream.
            pl.BlockSpec((tb, action_dim), lambda i: (i, 0)),
            # Weights / biases: constant block -> loaded once, VMEM-resident.
            pl.BlockSpec(w1.shape, lambda i: (0, 0)),
            pl.BlockSpec(b1.shape, lambda i: (0, 0)),
            pl.BlockSpec(w2.shape, lambda i: (0, 0)),
            pl.BlockSpec(b2.shape, lambda i: (0, 0)),
        ],
        out_specs=pl.BlockSpec((tb, out_dim), lambda i: (i, 0)),
        compiler_params=pltpu.CompilerParams(
            # Batch tiles are independent: shard across v7x's 2 TCs.
            dimension_semantics=("parallel",),
            # Explicit, portable scoped-VMEM budget (fits v5e/v6e/v7x);
            # padded double-buffered tiles here are ~1-2 MiB total.
            vmem_limit_bytes=32 * 1024 * 1024,
        ),
        cost_estimate=cost,
    )(x, w1, b1, w2, b2)

    return out[:B] if b_pad != B else out


def init_action_encoder_params(key, action_dim, hidden=32):
    """Deterministic init matching nn.Linear's default U(-1/sqrt(in), 1/sqrt(in))."""
    k1, k2, k3, k4 = jax.random.split(key, 4)
    bound1 = 1.0 / jnp.sqrt(action_dim)
    bound2 = 1.0 / jnp.sqrt(hidden)
    w1 = jax.random.uniform(k1, (action_dim, hidden), jnp.float32, -bound1, bound1)
    b1 = jax.random.uniform(k2, (1, hidden), jnp.float32, -bound1, bound1)
    w2 = jax.random.uniform(k3, (hidden, hidden), jnp.float32, -bound2, bound2)
    b2 = jax.random.uniform(k4, (1, hidden), jnp.float32, -bound2, bound2)
    return {"w1": w1, "b1": b1, "w2": w2, "b2": b2}


def _reference_forward(action, params):
    h = action @ params["w1"] + params["b1"]
    h = jnp.where(h >= 0, h, 0.1 * h)
    y = h @ params["w2"] + params["b2"]
    return jnp.where(y >= 0, y, 0.1 * y)


if __name__ == "__main__":
    key = jax.random.PRNGKey(0)
    k_params, k_x_small, k_x_big = jax.random.split(key, 3)

    action_dim = 4
    params = init_action_encoder_params(k_params, action_dim)

    # Small shape consistent with the module (the nominal test case).
    batch = 2
    action = jax.random.normal(k_x_small, (batch, action_dim), jnp.float32)
    out = jax.block_until_ready(action_encoder_forward(action, params))
    ref = _reference_forward(action, params)
    assert out.shape == (batch, 32), out.shape
    assert jnp.allclose(out, ref, atol=1e-5, rtol=1e-5), "small-batch mismatch"

    # Larger, non-multiple-of-tile batch to exercise the grid + padding path.
    batch_big = 1029
    action_big = jax.random.normal(k_x_big, (batch_big, action_dim), jnp.float32)
    out_big = jax.block_until_ready(action_encoder_forward(action_big, params))
    ref_big = _reference_forward(action_big, params)
    assert out_big.shape == (batch_big, 32), out_big.shape
    assert jnp.allclose(out_big, ref_big, atol=1e-5, rtol=1e-5), "big-batch mismatch"

    print("KERNEL_OK")
</pallas_src>

<mosaic_0001>
module attributes {stable_mosaic.version = 11 : i64} {
  func.func @action_encoder_kernel(%arg0: i32, %arg1: memref<8x4xf32, #tpu.memory_space<vmem>>, %arg2: memref<4x32xf32, #tpu.memory_space<vmem>>, %arg3: memref<1x32xf32, #tpu.memory_space<vmem>>, %arg4: memref<32x32xf32, #tpu.memory_space<vmem>>, %arg5: memref<1x32xf32, #tpu.memory_space<vmem>>, %arg6: memref<8x32xf32, #tpu.memory_space<vmem>>) attributes {dimension_semantics = [#tpu.dimension_semantics<parallel>], iteration_bounds = array<i64: 1>, scalar_prefetch = 0 : i64, scratch_operands = 0 : i64, tpu.core_type = #tpu.core_type<tc>, window_params = [{transform_indices = @transform_0, window_bounds = array<i64: 8, 4>}, {pipeline_mode = #tpu.pipeline_mode<synchronous>, transform_indices = @transform_1, window_bounds = array<i64: 4, 32>}, {pipeline_mode = #tpu.pipeline_mode<synchronous>, transform_indices = @transform_2, window_bounds = array<i64: 1, 32>}, {pipeline_mode = #tpu.pipeline_mode<synchronous>, transform_indices = @transform_3, window_bounds = array<i64: 32, 32>}, {pipeline_mode = #tpu.pipeline_mode<synchronous>, transform_indices = @transform_4, window_bounds = array<i64: 1, 32>}, {transform_indices = @transform_5, window_bounds = array<i64: 8, 32>}]} {
    %c0 = arith.constant 0 : index
    %c0_0 = arith.constant 0 : index
    %0 = vector.load %arg1[%c0, %c0_0] : memref<8x4xf32, #tpu.memory_space<vmem>>, vector<8x4xf32>
    %c0_1 = arith.constant 0 : index
    %c0_2 = arith.constant 0 : index
    %1 = vector.load %arg2[%c0_1, %c0_2] : memref<4x32xf32, #tpu.memory_space<vmem>>, vector<4x32xf32>
    %cst = arith.constant dense<0.000000e+00> : vector<8x32xf32>
    %2 = tpu.matmul %0, %1, %cst {dimension_numbers = #tpu.dot_dimension_numbers<[1], [0], [0], [1], [0, 0, 1, 1], [], []>} : vector<8x4xf32>, vector<4x32xf32>, vector<8x32xf32> -> vector<8x32xf32>
    %c0_3 = arith.constant 0 : index
    %c0_4 = arith.constant 0 : index
    %3 = vector.load %arg3[%c0_3, %c0_4] : memref<1x32xf32, #tpu.memory_space<vmem>>, vector<1x32xf32>
    %4 = vector.broadcast %3 : vector<1x32xf32> to vector<8x32xf32>
    %5 = arith.addf %2, %4 : vector<8x32xf32>
    %cst_5 = arith.constant 0.000000e+00 : f32
    %6 = vector.broadcast %cst_5 : f32 to vector<8x32xf32>
    %7 = arith.cmpf oge, %5, %6 : vector<8x32xf32>
    %cst_6 = arith.constant 1.000000e-01 : f32
    %8 = vector.broadcast %cst_6 : f32 to vector<8x32xf32>
    %9 = arith.mulf %8, %5 : vector<8x32xf32>
    %10 = arith.select %7, %5, %9 : vector<8x32xi1>, vector<8x32xf32>
    %c0_7 = arith.constant 0 : index
    %c0_8 = arith.constant 0 : index
    %11 = vector.load %arg4[%c0_7, %c0_8] : memref<32x32xf32, #tpu.memory_space<vmem>>, vector<32x32xf32>
    %cst_9 = arith.constant dense<0.000000e+00> : vector<8x32xf32>
    %12 = tpu.matmul %10, %11, %cst_9 {dimension_numbers = #tpu.dot_dimension_numbers<[1], [0], [0], [1], [0, 0, 1, 1], [], []>} : vector<8x32xf32>, vector<32x32xf32>, vector<8x32xf32> -> vector<8x32xf32>
    %c0_10 = arith.constant 0 : index
    %c0_11 = arith.constant 0 : index
    %13 = vector.load %arg5[%c0_10, %c0_11] : memref<1x32xf32, #tpu.memory_space<vmem>>, vector<1x32xf32>
    %14 = vector.broadcast %13 : vector<1x32xf32> to vector<8x32xf32>
    %15 = arith.addf %12, %14 : vector<8x32xf32>
    %cst_12 = arith.constant 0.000000e+00 : f32
    %16 = vector.broadcast %cst_12 : f32 to vector<8x32xf32>
    %17 = arith.cmpf oge, %15, %16 : vector<8x32xf32>
    %cst_13 = arith.constant 1.000000e-01 : f32
    %18 = vector.broadcast %cst_13 : f32 to vector<8x32xf32>
    %19 = arith.mulf %18, %15 : vector<8x32xf32>
    %20 = arith.select %17, %15, %19 : vector<8x32xi1>, vector<8x32xf32>
    %c0_14 = arith.constant 0 : index
    %c0_15 = arith.constant 0 : index
    %21 = vector.load %arg6[%c0_14, %c0_15] : memref<8x32xf32, #tpu.memory_space<vmem>>, vector<8x32xf32>
    tpu.vector_store %arg6[%c0_14, %c0_15], %20 {strides = array<i32>} : memref<8x32xf32, #tpu.memory_space<vmem>>, vector<8x32xf32>,
    return
  }
  func.func @transform_0(%arg0: i32) -> (i32, i32) {
    %c0_i32 = arith.constant 0 : i32
    %c0_i32_0 = arith.constant 0 : i32
    return %arg0, %c0_i32 : i32, i32
  }
  func.func @transform_1(%arg0: i32) -> (i32, i32) {
    %c0_i32 = arith.constant 0 : i32
    %c0_i32_0 = arith.constant 0 : i32
    %c0_i32_1 = arith.constant 0 : i32
    return %c0_i32, %c0_i32_0 : i32, i32
  }
  func.func @transform_2(%arg0: i32) -> (i32, i32) {
    %c0_i32 = arith.constant 0 : i32
    %c0_i32_0 = arith.constant 0 : i32
    %c0_i32_1 = arith.constant 0 : i32
    return %c0_i32, %c0_i32_0 : i32, i32
  }
  func.func @transform_3(%arg0: i32) -> (i32, i32) {
    %c0_i32 = arith.constant 0 : i32
    %c0_i32_0 = arith.constant 0 : i32
    %c0_i32_1 = arith.constant 0 : i32
    return %c0_i32, %c0_i32_0 : i32, i32
  }
  func.func @transform_4(%arg0: i32) -> (i32, i32) {
    %c0_i32 = arith.constant 0 : i32
    %c0_i32_0 = arith.constant 0 : i32
    %c0_i32_1 = arith.constant 0 : i32
    return %c0_i32, %c0_i32_0 : i32, i32
  }
  func.func @transform_5(%arg0: i32) -> (i32, i32) {
    %c0_i32 = arith.constant 0 : i32
    %c0_i32_0 = arith.constant 0 : i32
    return %arg0, %c0_i32 : i32, i32
  }
}

</mosaic_0001>

<llo_original>
// kernel: action_encoder_forward.1
$region0: #{action_encoder_forward.1}
  #allocation0 [shape = 'u32[]', space=smem, size = 0x4, offset = 0x4, fixed_abs, tag = 'smem constant byte address 0x4 - core index']
  #allocation1 [shape = 'u32[144,128]{1,0:T(1,128)}', space=vmem, size = 0x12000, scoped, tag = 'internal scratch']
  %s0 = inlined_call_operand.vmem [shape: f32[8,4], index: 0, kind: input, shape index: {}]
  %s1 = inlined_call_operand.vmem [shape: f32[4,32], index: 1, kind: input, shape index: {}]
  %s2 = inlined_call_operand.vmem [shape: f32[1,32], index: 2, kind: input, shape index: {}]
  %s3 = inlined_call_operand.hbm [shape: f32[32,32], index: 3, kind: input, shape index: {}]
  %s4 = inlined_call_operand.vmem [shape: f32[1,32], index: 4, kind: input, shape index: {}]
  %s5 = inlined_call_operand.vmem [shape: f32[8,32], index: 5, kind: output, shape index: {}]
  %s6 = sld [smem:[#allocation0]]
  $region34: #{action_encoder_forward.1} parent=0
    _
  %s8 = ssub.s32 1, %s6
  %s9 = scalar_select 0, %s8, %s6
  $region1: #{action_encoder_forward.1} parent=0
    #allocation2 [shape = 'u8[16384]{0}', space=vmem, size = 0x4000, scoped, tag = 'input window, operand 3, single buffered']
    #allocation3 [shape = 's32[1]{0}', space=sflag, size = 0x4, scoped, tag = 'scoped memory for action_encoder_forward.1']
    %10 = vsyncpa [#allocation3], 0
    // Predicated region
    $region2: #{action_encoder_forward.1} parent=1 // pred_check
      _
    $region3: #{action_encoder_forward.1} parent=1 // pred_check_branch
      %12 = sbr.rel (0) target = $region5
    $region4: #{action_encoder_forward.1} parent=1 // pred_region
      _
    $region5: #{action_encoder_forward.1} parent=1 // pred_fallthru
      _
    // Predicated region
    $region6: #{action_encoder_forward.1} parent=1 // pred_check
      _
    $region7: #{action_encoder_forward.1} parent=1 // pred_check_branch
      %14 = sbr.rel (0) target = $region9
    $region8: #{action_encoder_forward.1} parent=1 // pred_region
      _
    $region9: #{action_encoder_forward.1} parent=1 // pred_fallthru
      _
    // Predicated region
    $region10: #{action_encoder_forward.1} parent=1 // pred_check
      _
    $region11: #{action_encoder_forward.1} parent=1 // pred_check_branch
      %16 = sbr.rel (0) target = $region13
    $region12: #{action_encoder_forward.1} parent=1 // pred_region
      _
    $region13: #{action_encoder_forward.1} parent=1 // pred_fallthru
      _
    // Predicated region
    $region14: #{action_encoder_forward.1} parent=1 // pred_check
      _
    $region15: #{action_encoder_forward.1} parent=1 // pred_check_branch
      %18 = sbr.rel (0) target = $region17
    $region16: #{action_encoder_forward.1} parent=1 // pred_region
      %s20 = ssub.s32 512, 512
      %21 = vsyncadd [#allocation3], %s20
      %s22 = sshll.u32 [#allocation2], 4
      %s23 = int_to_ptr.vmem [resolvable:$true] %s22
      %28 = dma.hbm_to_vmem [thread:$0]  %s3, 512, %s23, [#allocation3], 128, 128, 8
    $region17: #{action_encoder_forward.1} parent=1 // pred_fallthru
      _
    // Predicated region
    $region18: #{action_encoder_forward.1} parent=1 // pred_check
      _
    $region19: #{action_encoder_forward.1} parent=1 // pred_check_branch
      %30 = sbr.rel (0) target = $region21
    $region20: #{action_encoder_forward.1} parent=1 // pred_region
      _
    $region21: #{action_encoder_forward.1} parent=1 // pred_fallthru
      _
    // Predicated region
    $region22: #{action_encoder_forward.1} parent=1 // pred_check
      _
    $region23: #{action_encoder_forward.1} parent=1 // pred_check_branch
      %32 = sbr.rel (0) target = $region25
    $region24: #{action_encoder_forward.1} parent=1 // pred_region
      %33 = dma.done [#allocation3], 512
    $region25: #{action_encoder_forward.1} parent=1 // pred_fallthru
      _
    %v34 = vld [vmem:[%s0] sm:$0xff]
    %v35 = vld [vmem:[%s1] sm:$0xf]
    %v36 = vld [vmem:[%s2] sm:$0x1]
    %v38 = vlaneseq
    %v39 = vshrl.u32 %v38, 7
    %v40 = vsub.s32 0, %v39
    %v41 = vrot.slane %v36, %v40
    %vm43 = vcmask 31744
    %v45 = vsel %vm43, %v34, 0
    %vm47 = vcmask 1043456
    %v49 = vsel %vm47, %v35, 0
    %51 = vmatprep.subr.mxu0 0.0
    %52 = vmatpush1.msra.mxu0 %v49
    %53 = vmatprep.subr.mxu0 0.0
    %54 = vmatpush1.msra.mxu0 0.0
    %55 = vmatprep.subr.mxu0 0.0
    %56 = vmatpush1.msra.mxu0 0.0
    %57 = vmatprep.subr.mxu0 0.0
    %58 = vmatpush1.msra.mxu0 0.0
    %59 = vmatprep.subr.mxu0 0.0
    %60 = vmatpush1.msra.mxu0 0.0
    %61 = vmatprep.subr.mxu0 0.0
    %62 = vmatpush1.msra.mxu0 0.0
    %63 = vmatprep.subr.mxu0 0.0
    %64 = vmatpush1.msra.mxu0 0.0
    %65 = vmatprep.subr.mxu0 0.0
    %66 = vmatpush1.msra.mxu0 0.0
    %67 = vmatprep.subr.mxu0 0.0
    %68 = vmatpush1.msra.mxu0 0.0
    %69 = vmatprep.subr.mxu0 0.0
    %70 = vmatpush1.msra.mxu0 0.0
    %71 = vmatprep.subr.mxu0 0.0
    %72 = vmatpush1.msra.mxu0 0.0
    %73 = vmatprep.subr.mxu0 0.0
    %74 = vmatpush1.msra.mxu0 0.0
    %75 = vmatprep.subr.mxu0 0.0
    %76 = vmatpush1.msra.mxu0 0.0
    %77 = vmatprep.subr.mxu0 0.0
    %78 = vmatpush1.msra.mxu0 0.0
    %79 = vmatprep.subr.mxu0 0.0
    %80 = vmatpush1.msra.mxu0 0.0
    %81 = vmatprep.subr.mxu0 0.0
    %82 = vmatpush1.msra.mxu0 0.0
    %83 = vmatprep.subr.mxu0 0.0
    %84 = vmatpush1.msra.mxu0 0.0
    %85 = vmatprep.subr.mxu0 0.0
    %86 = vmatpush1.msra.mxu0 0.0
    %87 = vmatprep.subr.mxu0 0.0
    %88 = vmatpush1.msra.mxu0 0.0
    %89 = vmatprep.subr.mxu0 0.0
    %90 = vmatpush1.msra.mxu0 0.0
    %91 = vmatprep.subr.mxu0 0.0
    %92 = vmatpush1.msra.mxu0 0.0
    %93 = vmatprep.subr.mxu0 0.0
    %94 = vmatpush1.msra.mxu0 0.0
    %95 = vmatprep.subr.mxu0 0.0
    %96 = vmatpush1.msra.mxu0 0.0
    %97 = vmatprep.subr.mxu0 0.0
    %98 = vmatpush1.msra.mxu0 0.0
    %99 = vmatprep.subr.mxu0 0.0
    %100 = vmatpush1.msra.mxu0 0.0
    %101 = vmatprep.subr.mxu0 0.0
    %102 = vmatpush1.msra.mxu0 0.0
    %103 = vmatprep.subr.mxu0 0.0
    %104 = vmatpush1.msra.mxu0 0.0
    %105 = vmatprep.subr.mxu0 0.0
    %106 = vmatpush1.msra.mxu0 0.0
    %107 = vmatprep.subr.mxu0 0.0
    %108 = vmatpush1.msra.mxu0 0.0
    %109 = vmatprep.subr.mxu0 0.0
    %110 = vmatpush1.msra.mxu0 0.0
    %111 = vmatprep.subr.mxu0 0.0
    %112 = vmatpush1.msra.mxu0 0.0
    %113 = vmatprep.subr.mxu0 0.0
    %114 = vmatpush1.msra.mxu0 0.0
    %115 = vmatprep.mubr.f32.mxu0 0.0
    %116 = vmatmul.mubr.f32.gmra.mrb[0].mxu0 %v45
    %v117 = vpop.f32.mrb[0].mxu0
    %v118 = vadd.f32 %v41, %v117
    %v119 = vpop.f32.mrb[0].mxu0
    %120 = vdwg.mxu0
    %vm121 = vcmp.ge.f32.partialorder %v118, 0.0
    %v122 = vmul.f32 %v118, 0.1
    %v123 = vsel %vm121, %v118, %v122
    %v124 = vld [vmem:[#allocation2] sm:$0xff]
    %v125 = vld [vmem:[#allocation2 + $0x8] sm:$0xff]
    %v126 = vld [vmem:[#allocation2 + $0x10] sm:$0xff]
    %v127 = vld [vmem:[#allocation2 + $0x18] sm:$0xff]
    %v128 = vld [vmem:[%s4] sm:$0x1]
    %v130 = vlaneseq
    %v131 = vshrl.u32 %v130, 7
    %v132 = vsub.s32 0, %v131
    %v133 = vrot.slane %v128, %v132
    %vm135 = vcmask 261120
    %v137 = vsel %vm135, %v123, 0
    %139 = vmatprep.subr.mxu0 0.0
    %140 = vmatpush1.msra.mxu0 %v124
    %141 = vmatprep.subr.mxu0 0.0
    %142 = vmatpush1.msra.mxu0 %v125
    %143 = vmatprep.subr.mxu0 0.0
    %144 = vmatpush1.msra.mxu0 %v126
    %145 = vmatprep.subr.mxu0 0.0
    %146 = vmatpush1.msra.mxu0 %v127
    %147 = vmatprep.subr.mxu0 0.0
    %148 = vmatpush1.msra.mxu0 0.0
    %149 = vmatprep.subr.mxu0 0.0
    %150 = vmatpush1.msra.mxu0 0.0
    %151 = vmatprep.subr.mxu0 0.0
    %152 = vmatpush1.msra.mxu0 0.0
    %153 = vmatprep.subr.mxu0 0.0
    %154 = vmatpush1.msra.mxu0 0.0
    %155 = vmatprep.subr.mxu0 0.0
    %156 = vmatpush1.msra.mxu0 0.0
    %157 = vmatprep.subr.mxu0 0.0
    %158 = vmatpush1.msra.mxu0 0.0
    %159 = vmatprep.subr.mxu0 0.0
    %160 = vmatpush1.msra.mxu0 0.0
    %161 = vmatprep.subr.mxu0 0.0
    %162 = vmatpush1.msra.mxu0 0.0
    %163 = vmatprep.subr.mxu0 0.0
    %164 = vmatpush1.msra.mxu0 0.0
    %165 = vmatprep.subr.mxu0 0.0
    %166 = vmatpush1.msra.mxu0 0.0
    %167 = vmatprep.subr.mxu0 0.0
    %168 = vmatpush1.msra.mxu0 0.0
    %169 = vmatprep.subr.mxu0 0.0
    %170 = vmatpush1.msra.mxu0 0.0
    %171 = vmatprep.subr.mxu0 0.0
    %172 = vmatpush1.msra.mxu0 0.0
    %173 = vmatprep.subr.mxu0 0.0
    %174 = vmatpush1.msra.mxu0 0.0
    %175 = vmatprep.subr.mxu0 0.0
    %176 = vmatpush1.msra.mxu0 0.0
    %177 = vmatprep.subr.mxu0 0.0
    %178 = vmatpush1.msra.mxu0 0.0
    %179 = vmatprep.subr.mxu0 0.0
    %180 = vmatpush1.msra.mxu0 0.0
    %181 = vmatprep.subr.mxu0 0.0
    %182 = vmatpush1.msra.mxu0 0.0
    %183 = vmatprep.subr.mxu0 0.0
    %184 = vmatpush1.msra.mxu0 0.0
    %185 = vmatprep.subr.mxu0 0.0
    %186 = vmatpush1.msra.mxu0 0.0
    %187 = vmatprep.subr.mxu0 0.0
    %188 = vmatpush1.msra.mxu0 0.0
    %189 = vmatprep.subr.mxu0 0.0
    %190 = vmatpush1.msra.mxu0 0.0
    %191 = vmatprep.subr.mxu0 0.0
    %192 = vmatpush1.msra.mxu0 0.0
    %193 = vmatprep.subr.mxu0 0.0
    %194 = vmatpush1.msra.mxu0 0.0
    %195 = vmatprep.subr.mxu0 0.0
    %196 = vmatpush1.msra.mxu0 0.0
    %197 = vmatprep.subr.mxu0 0.0
    %198 = vmatpush1.msra.mxu0 0.0
    %199 = vmatprep.subr.mxu0 0.0
    %200 = vmatpush1.msra.mxu0 0.0
    %201 = vmatprep.subr.mxu0 0.0
    %202 = vmatpush1.msra.mxu0 0.0
    %203 = vmatprep.mubr.f32.mxu0 0.0
    %204 = vmatmul.mubr.f32.gmra.mrb[0].mxu0 %v137
    %v205 = vpop.f32.mrb[0].mxu0
    %v206 = vadd.f32 %v133, %v205
    %v207 = vpop.f32.mrb[0].mxu0
    %208 = vdwg.mxu0
    %vm209 = vcmp.ge.f32.partialorder %v206, 0.0
    %v210 = vmul.f32 %v206, 0.1
    %v211 = vsel %vm209, %v206, %v210
    %212 = vst.msk [vmem:[%s5] sm:$0xff] %vm135, %v211
    // Predicated region
    $region26: #{action_encoder_forward.1} parent=1 // pred_check
      _
    $region27: #{action_encoder_forward.1} parent=1 // pred_check_branch
      %214 = sbr.rel (0) target = $region29
    $region28: #{action_encoder_forward.1} parent=1 // pred_region
      _
    $region29: #{action_encoder_forward.1} parent=1 // pred_fallthru
      _
    // Predicated region
    $region30: #{action_encoder_forward.1} parent=1 // pred_check
      _
    $region31: #{action_encoder_forward.1} parent=1 // pred_check_branch
      %216 = sbr.rel (0) target = $region33
    $region32: #{action_encoder_forward.1} parent=1 // pred_region
      _
    $region33: #{action_encoder_forward.1} parent=1 // pred_fallthru
      _
    %217 = vsyncpa [#allocation3], 1

</llo_original>
